<compile_context>
chip_gen: v6e
topology: v6e:2x2x1
jax: 0.10.0
libtpu: 0.0.40
codegen_flags: <defaults>
</compile_context>

<pallas_src>
import jax
import jax.numpy as jnp
from jax import lax
from jax.experimental import pallas as pl
from jax.experimental.pallas import tpu as pltpu

LANE = 128  # TPU lane width; every packed segment is padded to one lane group.


# ---------------------------------------------------------------------------
# Kernel: whole sequence in one invocation, state carried in registers
# ---------------------------------------------------------------------------
def seq_kernel(data_ref, state0_ref, w_big_ref, w_i2h2_ref, w_h2o_ref, out_ref):
    """data_ref: (T,B,128)  [x | 1 | 0-pad]            (bias const at lane IN)
       state0_ref: (B,384)  [h1 | h2 | o] lane-aligned
       w_big_ref: (512,256) fused layer-1 + layer-2(recurrent/feedback) weights
       w_i2h2_ref, w_h2o_ref: (128,128) zero-padded
       out_ref: (T,B,384)   [h1 | h2 | out] lane-aligned
    """
    T = data_ref.shape[0]

    # Weights are loaded once and stay live across the (unrolled) time loop.
    w_big = w_big_ref[...]
    w12 = w_i2h2_ref[...]
    w2o = w_h2o_ref[...]

    def act(x):  # sigmoid as a single EUP tanh op (exact: sigmoid(0) == 0.5)
        return 0.5 * (jnp.tanh(0.5 * x) + 1.0)

    s0 = state0_ref[...]
    carry0 = (s0[:, 0:LANE], s0[:, LANE:2 * LANE], s0[:, 2 * LANE:3 * LANE])

    def step(t, carry):
        h1p, h2p, op = carry                                   # each (B,128), in vregs
        x = data_ref[t]                                        # (B,128) aligned load
        xcat = jnp.concatenate([x, h1p, h2p, op], axis=1)      # (B,512): 128-aligned placement
        big = jnp.dot(xcat, w_big, preferred_element_type=jnp.float32)   # (B,256)
        h1n = act(big[:, :LANE])                               # layer-1 (bias folded in w_big)
        pre2 = jnp.dot(h1n, w12, preferred_element_type=jnp.float32) + big[:, LANE:]
        h2n = act(pre2)                                        # layer-2 (bias folded in w_big)
        on = jnp.dot(h2n, w2o, preferred_element_type=jnp.float32)  # readout (b_h2o folded)
        # Three aligned, unmasked (B,128) stores into the resident output slab.
        out_ref[t, :, 0:LANE] = h1n
        out_ref[t, :, LANE:2 * LANE] = h2n
        out_ref[t, :, 2 * LANE:3 * LANE] = on
        return (h1n, h2n, on)

    lax.fori_loop(0, T, step, carry0, unroll=True)


# ---------------------------------------------------------------------------
# Parameter init (PyTorch conventions) and one-time packing
# ---------------------------------------------------------------------------
def init_params(key, input_size, hidden_size, output_size, feedback_scaling):
    """Deterministic init mirroring the PyTorch module (fb_type = 0).
    Weights stored in PyTorch (out_features, in_features) convention."""
    H1, H2 = hidden_size
    O = output_size
    fs1, fs2 = feedback_scaling
    ks = jax.random.split(key, 8)
    return {
        # RNN1 (data_size=input, hidden=H1, cell-output-size = H2 + O)
        "w_i2h1": jax.random.uniform(ks[0], (H1, input_size), jnp.float32, -1.0, 1.0),
        "w_h2h1": jax.random.uniform(ks[1], (H1, H1), jnp.float32, -0.5, 0.5),
        "b_h2h1": jnp.full((H1,), -1.0, jnp.float32),
        "w_o2h1": jax.random.uniform(ks[2], (H1, H2 + O), jnp.float32, -fs1, fs1),
        # RNN2 (data_size=H1, hidden=H2, cell-output-size = O)
        "w_i2h2": jax.random.uniform(ks[3], (H2, H1), jnp.float32, -1.0, 1.0),
        "w_h2h2": jax.random.uniform(ks[4], (H2, H2), jnp.float32, -0.5, 0.5),
        "b_h2h2": jnp.full((H2,), -1.0, jnp.float32),
        "w_o2h2": jax.random.uniform(ks[5], (H2, O), jnp.float32, -fs2, fs2),
        # readout
        "w_h2o": jax.random.uniform(ks[6], (O, H2), jnp.float32, -1.0, 1.0),
        "b_h2o": jax.random.uniform(ks[7], (O,), jnp.float32, -1.0, 1.0),
    }


def pack_params(params):
    """One-time, lane-aligned weight packing (hoisted out of the recurrent path).

    xcat lane layout (4 segments x 128 lanes, K = 512):
        [0:IN)        data
        [IN]          constant 1.0        (carries b_h2h1 / b_h2h2)
        [128:128+H1)  h1_prev
        [256:256+H2)  h2_prev
        [384:384+O)   o_prev
    w_big columns (2 segments x 128 lanes, N = 256):
        [0:H1)        layer-1 preactivation (i2h1 + h2h1 + o2h1 feedback + b_h2h1)
        [128:128+H2)  layer-2 recurrent+feedback partial (h2h2 + o2h2 + b_h2h2)
    All padding rows/columns are zero, so garbage/0.5 values in padding lanes of
    the carried state never contribute.
    """
    IN = params["w_i2h1"].shape[1]
    H1 = params["w_h2h1"].shape[0]
    H2 = params["w_h2h2"].shape[0]
    O = params["w_h2o"].shape[0]
    assert IN < LANE and H1 <= LANE and H2 < LANE and O <= LANE

    K, N = 4 * LANE, 2 * LANE
    o2h1_t = params["w_o2h1"].T                                   # (H2+O, H1)

    w_big = jnp.zeros((K, N), jnp.float32)
    # layer-1 preactivation columns [0:H1)
    w_big = w_big.at[0:IN, 0:H1].set(params["w_i2h1"].T)
    w_big = w_big.at[IN, 0:H1].set(params["b_h2h1"])              # bias via const-1 lane
    w_big = w_big.at[LANE:LANE + H1, 0:H1].set(params["w_h2h1"].T)
    w_big = w_big.at[2 * LANE:2 * LANE + H2, 0:H1].set(o2h1_t[:H2])     # feedback from h2_prev
    w_big = w_big.at[3 * LANE:3 * LANE + O, 0:H1].set(o2h1_t[H2:])      # feedback from o_prev
    # layer-2 recurrent + feedback partial columns [128:128+H2)
    w_big = w_big.at[IN, LANE:LANE + H2].set(params["b_h2h2"])
    w_big = w_big.at[2 * LANE:2 * LANE + H2, LANE:LANE + H2].set(params["w_h2h2"].T)
    w_big = w_big.at[3 * LANE:3 * LANE + O, LANE:LANE + H2].set(params["w_o2h2"].T)

    w_i2h2 = jnp.zeros((LANE, LANE), jnp.float32).at[0:H1, 0:H2].set(params["w_i2h2"].T)

    # The h2 activation's padding lane H2 is exactly sigmoid(0) = 0.5 (its
    # preactivation column is all-zero), so row H2 of the padded readout weight
    # carries 2*b_h2o -> exact bias fold.  (Valid for sigmoid nonlin only.)
    w_h2o = (jnp.zeros((LANE, LANE), jnp.float32)
             .at[0:H2, 0:O].set(params["w_h2o"].T)
             .at[H2, 0:O].set(2.0 * params["b_h2o"]))

    return {"w_big": w_big, "w_i2h2": w_i2h2, "w_h2o": w_h2o,
            "sizes": (IN, H1, H2, O)}


# ---------------------------------------------------------------------------
# Wrappers
# ---------------------------------------------------------------------------
def rnn_two_layers_sequence(data_seq, h0, o0, packed):
    """Run the full recurrence (o_prev(t) = output(t-1)) in ONE pallas_call.

    Returns (out_seq (T,B,O), h1_seq (T,B,H1), h2_seq (T,B,H2)).
    """
    IN, H1, H2, O = packed["sizes"]
    T, B, _ = data_seq.shape

    # One-time lane-aligned packing of the inputs (outside the recurrent path).
    data_pad = jnp.zeros((T, B, LANE), jnp.float32)
    data_pad = data_pad.at[:, :, :IN].set(data_seq)
    data_pad = data_pad.at[:, :, IN].set(1.0)                 # constant-1 bias lane

    state0 = jnp.zeros((B, 3 * LANE), jnp.float32)
    state0 = state0.at[:, 0:H1].set(h0[0])
    state0 = state0.at[:, LANE:LANE + H2].set(h0[1])
    state0 = state0.at[:, 2 * LANE:2 * LANE + O].set(o0)

    vmem = pl.BlockSpec(memory_space=pltpu.MemorySpace.VMEM)
    out_packed = pl.pallas_call(
        seq_kernel,
        out_shape=jax.ShapeDtypeStruct((T, B, 3 * LANE), jnp.float32),
        in_specs=[vmem] * 5,          # everything resident in VMEM, no grid loop
        out_specs=vmem,               # single writeback at the end of the call
    )(data_pad, state0, packed["w_big"], packed["w_i2h2"], packed["w_h2o"])

    h1_seq = out_packed[:, :, 0:H1]
    h2_seq = out_packed[:, :, LANE:LANE + H2]
    out_seq = out_packed[:, :, 2 * LANE:2 * LANE + O]
    return out_seq, h1_seq, h2_seq


def rnn_two_layers_forward(data, h_prev, o_prev, packed):
    """Single-step Pallas forward (matches the module's forward()).
    Implemented as the sequence kernel with T=1 (no separate launch path)."""
    out_seq, h1_seq, h2_seq = rnn_two_layers_sequence(data[None], h_prev, o_prev, packed)
    return out_seq[0], [h1_seq[0], h2_seq[0]]


# ---------------------------------------------------------------------------
# Pure-JAX reference (mirrors the PyTorch forward, fb_type = 0)
# ---------------------------------------------------------------------------
def rnn_two_layers_ref(data, h_prev, o_prev, p):
    fb1 = jnp.concatenate([h_prev[1], o_prev], axis=1)
    h1 = jax.nn.sigmoid(
        data @ p["w_i2h1"].T + h_prev[0] @ p["w_h2h1"].T + p["b_h2h1"] + fb1 @ p["w_o2h1"].T)
    h2 = jax.nn.sigmoid(
        h1 @ p["w_i2h2"].T + h_prev[1] @ p["w_h2h2"].T + p["b_h2h2"] + o_prev @ p["w_o2h2"].T)
    out = h2 @ p["w_h2o"].T + p["b_h2o"]
    return out, [h1, h2]


# ---------------------------------------------------------------------------
if __name__ == "__main__":
    B = 8                      # multiple of 8 (full sublane groups)
    T = 6
    INPUT_SIZE = 16
    HIDDEN_SIZE = [32, 32]
    OUTPUT_SIZE = 8
    FEEDBACK_SCALING = [0.5, 1.0]   # fb_type = 0, nonlin = 'sigmoid'

    key = jax.random.PRNGKey(0)
    kp, kd = jax.random.split(key)
    params = init_params(kp, INPUT_SIZE, HIDDEN_SIZE, OUTPUT_SIZE, FEEDBACK_SCALING)
    packed = pack_params(params)    # hoisted: done once, not per call

    data_seq = jax.random.normal(kd, (T, B, INPUT_SIZE), jnp.float32)
    # init_states(): h = 0.5, output = 0
    h0 = [jnp.full((B, HIDDEN_SIZE[0]), 0.5, jnp.float32),
          jnp.full((B, HIDDEN_SIZE[1]), 0.5, jnp.float32)]
    o0 = jnp.zeros((B, OUTPUT_SIZE), jnp.float32)

    # --- single-step kernel vs reference --------------------------------
    out, (h1, h2) = rnn_two_layers_forward(data_seq[0], h0, o0, packed)
    jax.block_until_ready((out, h1, h2))
    out_r, (h1_r, h2_r) = rnn_two_layers_ref(data_seq[0], h0, o0, params)
    assert jnp.allclose(out, out_r, atol=1e-4, rtol=1e-4)
    assert jnp.allclose(h1, h1_r, atol=1e-4, rtol=1e-4)
    assert jnp.allclose(h2, h2_r, atol=1e-4, rtol=1e-4)

    # --- whole-sequence kernel (time loop fully inside one pallas_call) --
    out_seq, h1_seq, h2_seq = rnn_two_layers_sequence(data_seq, h0, o0, packed)
    jax.block_until_ready((out_seq, h1_seq, h2_seq))

    # reference recurrence: feed output(t-1) back as o_prev(t)
    h_prev, o_prev = [h0[0], h0[1]], o0
    for t in range(T):
        o_t, h_prev = rnn_two_layers_ref(data_seq[t], h_prev, o_prev, params)
        assert jnp.allclose(out_seq[t], o_t, atol=1e-4, rtol=1e-4)
        assert jnp.allclose(h1_seq[t], h_prev[0], atol=1e-4, rtol=1e-4)
        assert jnp.allclose(h2_seq[t], h_prev[1], atol=1e-4, rtol=1e-4)
        o_prev = o_t

    print("KERNEL_OK")
</pallas_src>

<mosaic_0001>
module attributes {stable_mosaic.version = 11 : i64} {
  func.func @seq_kernel(%arg0: memref<1x8x128xf32, #tpu.memory_space<vmem>>, %arg1: memref<8x384xf32, #tpu.memory_space<vmem>>, %arg2: memref<512x256xf32, #tpu.memory_space<vmem>>, %arg3: memref<128x128xf32, #tpu.memory_space<vmem>>, %arg4: memref<128x128xf32, #tpu.memory_space<vmem>>, %arg5: memref<1x8x384xf32, #tpu.memory_space<vmem>>) attributes {dimension_semantics = [], scalar_prefetch = 0 : i64, scratch_operands = 0 : i64, tpu.core_type = #tpu.core_type<tc>} {
    %c0 = arith.constant 0 : index
    %c0_0 = arith.constant 0 : index
    %0 = vector.load %arg2[%c0, %c0_0] : memref<512x256xf32, #tpu.memory_space<vmem>>, vector<512x256xf32>
    %c0_1 = arith.constant 0 : index
    %c0_2 = arith.constant 0 : index
    %1 = vector.load %arg3[%c0_1, %c0_2] : memref<128x128xf32, #tpu.memory_space<vmem>>, vector<128x128xf32>
    %c0_3 = arith.constant 0 : index
    %c0_4 = arith.constant 0 : index
    %2 = vector.load %arg4[%c0_3, %c0_4] : memref<128x128xf32, #tpu.memory_space<vmem>>, vector<128x128xf32>
    %c0_5 = arith.constant 0 : index
    %c0_6 = arith.constant 0 : index
    %3 = vector.load %arg1[%c0_5, %c0_6] : memref<8x384xf32, #tpu.memory_space<vmem>>, vector<8x384xf32>
    %4 = vector.extract_strided_slice %3 {offsets = [0, 0], sizes = [8, 128], strides = [1, 1]} : vector<8x384xf32> to vector<8x128xf32>
    %5 = vector.extract_strided_slice %3 {offsets = [0, 128], sizes = [8, 128], strides = [1, 1]} : vector<8x384xf32> to vector<8x128xf32>
    %6 = vector.extract_strided_slice %3 {offsets = [0, 256], sizes = [8, 128], strides = [1, 1]} : vector<8x384xf32> to vector<8x128xf32>
    %c0_i32 = arith.constant 0 : i32
    %7 = arith.index_cast %c0_i32 : i32 to index
    %c0_7 = arith.constant 0 : index
    %c0_8 = arith.constant 0 : index
    %8 = vector.load %arg0[%7, %c0_7, %c0_8] : memref<1x8x128xf32, #tpu.memory_space<vmem>>, vector<1x8x128xf32>
    %9 = vector.shape_cast %8 : vector<1x8x128xf32> to vector<8x128xf32>
    %10 = tpu.concatenate %9, %4, %5, %6 in 1 : vector<8x128xf32>, vector<8x128xf32>, vector<8x128xf32>, vector<8x128xf32> -> vector<8x512xf32>
    %cst = arith.constant dense<0.000000e+00> : vector<8x256xf32>
    %11 = tpu.matmul %10, %0, %cst {dimension_numbers = #tpu.dot_dimension_numbers<[1], [0], [0], [1], [0, 0, 1, 1], [], []>} : vector<8x512xf32>, vector<512x256xf32>, vector<8x256xf32> -> vector<8x256xf32>
    %12 = vector.extract_strided_slice %11 {offsets = [0, 0], sizes = [8, 128], strides = [1, 1]} : vector<8x256xf32> to vector<8x128xf32>
    %cst_9 = arith.constant 5.000000e-01 : f32
    %13 = vector.broadcast %cst_9 : f32 to vector<8x128xf32>
    %14 = arith.mulf %13, %12 : vector<8x128xf32>
    %15 = math.tanh %14 : vector<8x128xf32>
    %cst_10 = arith.constant 1.000000e+00 : f32
    %16 = vector.broadcast %cst_10 : f32 to vector<8x128xf32>
    %17 = arith.addf %15, %16 : vector<8x128xf32>
    %cst_11 = arith.constant 5.000000e-01 : f32
    %18 = vector.broadcast %cst_11 : f32 to vector<8x128xf32>
    %19 = arith.mulf %18, %17 : vector<8x128xf32>
    %cst_12 = arith.constant dense<0.000000e+00> : vector<8x128xf32>
    %20 = tpu.matmul %19, %1, %cst_12 {dimension_numbers = #tpu.dot_dimension_numbers<[1], [0], [0], [1], [0, 0, 1, 1], [], []>} : vector<8x128xf32>, vector<128x128xf32>, vector<8x128xf32> -> vector<8x128xf32>
    %21 = vector.extract_strided_slice %11 {offsets = [0, 128], sizes = [8, 128], strides = [1, 1]} : vector<8x256xf32> to vector<8x128xf32>
    %22 = arith.addf %20, %21 : vector<8x128xf32>
    %cst_13 = arith.constant 5.000000e-01 : f32
    %23 = vector.broadcast %cst_13 : f32 to vector<8x128xf32>
    %24 = arith.mulf %23, %22 : vector<8x128xf32>
    %25 = math.tanh %24 : vector<8x128xf32>
    %cst_14 = arith.constant 1.000000e+00 : f32
    %26 = vector.broadcast %cst_14 : f32 to vector<8x128xf32>
    %27 = arith.addf %25, %26 : vector<8x128xf32>
    %cst_15 = arith.constant 5.000000e-01 : f32
    %28 = vector.broadcast %cst_15 : f32 to vector<8x128xf32>
    %29 = arith.mulf %28, %27 : vector<8x128xf32>
    %cst_16 = arith.constant dense<0.000000e+00> : vector<8x128xf32>
    %30 = tpu.matmul %29, %2, %cst_16 {dimension_numbers = #tpu.dot_dimension_numbers<[1], [0], [0], [1], [0, 0, 1, 1], [], []>} : vector<8x128xf32>, vector<128x128xf32>, vector<8x128xf32> -> vector<8x128xf32>
    %31 = arith.index_cast %c0_i32 : i32 to index
    %c0_17 = arith.constant 0 : index
    %c0_18 = arith.constant 0 : index
    %32 = vector.load %arg5[%31, %c0_17, %c0_18] : memref<1x8x384xf32, #tpu.memory_space<vmem>>, vector<1x8x128xf32>
    %33 = vector.shape_cast %32 : vector<1x8x128xf32> to vector<8x128xf32>
    %34 = vector.shape_cast %19 : vector<8x128xf32> to vector<1x8x128xf32>
    tpu.vector_store %arg5[%31, %c0_17, %c0_18], %34 {strides = array<i32>} : memref<1x8x384xf32, #tpu.memory_space<vmem>>, vector<1x8x128xf32>,
    %35 = arith.index_cast %c0_i32 : i32 to index
    %c0_19 = arith.constant 0 : index
    %c128 = arith.constant 128 : index
    %36 = vector.load %arg5[%35, %c0_19, %c128] : memref<1x8x384xf32, #tpu.memory_space<vmem>>, vector<1x8x128xf32>
    %37 = vector.shape_cast %36 : vector<1x8x128xf32> to vector<8x128xf32>
    %38 = vector.shape_cast %29 : vector<8x128xf32> to vector<1x8x128xf32>
    tpu.vector_store %arg5[%35, %c0_19, %c128], %38 {strides = array<i32>} : memref<1x8x384xf32, #tpu.memory_space<vmem>>, vector<1x8x128xf32>,
    %39 = arith.index_cast %c0_i32 : i32 to index
    %c0_20 = arith.constant 0 : index
    %c256 = arith.constant 256 : index
    %40 = vector.load %arg5[%39, %c0_20, %c256] : memref<1x8x384xf32, #tpu.memory_space<vmem>>, vector<1x8x128xf32>
    %41 = vector.shape_cast %40 : vector<1x8x128xf32> to vector<8x128xf32>
    %42 = vector.shape_cast %30 : vector<8x128xf32> to vector<1x8x128xf32>
    tpu.vector_store %arg5[%39, %c0_20, %c256], %42 {strides = array<i32>} : memref<1x8x384xf32, #tpu.memory_space<vmem>>, vector<1x8x128xf32>,
    %c1_i32 = arith.constant 1 : i32
    return
  }
}

</mosaic_0001>

<llo_original>
// kernel: tpu_custom_call.1
$region0: #{tpu_custom_call.1}
  #allocation0 [shape = 'u32[]', space=smem, size = 0x4, offset = 0x4, fixed_abs, tag = 'smem constant byte address 0x4 - core index']
  #allocation1 [shape = 'u32[144,128]{1,0:T(1,128)}', space=vmem, size = 0x12000, scoped, tag = 'internal scratch']
  %s0 = inlined_call_operand.hbm [shape: f32[1,8,128], index: 0, kind: input, shape index: {}]
  %s1 = inlined_call_operand.hbm [shape: f32[8,384], index: 1, kind: input, shape index: {}]
  %s2 = inlined_call_operand.hbm [shape: f32[512,256], index: 2, kind: input, shape index: {}]
  %s3 = inlined_call_operand.hbm [shape: f32[128,128], index: 3, kind: input, shape index: {}]
  %s4 = inlined_call_operand.hbm [shape: f32[128,128], index: 4, kind: input, shape index: {}]
  %s5 = inlined_call_operand.hbm [shape: f32[1,8,384], index: 5, kind: output, shape index: {}]
  %s6 = sld [smem:[#allocation0]]
  $region50: #{tpu_custom_call.1} parent=0
    _
  %s8 = ssub.s32 1, %s6
  %s9 = scalar_select 0, %s8, %s6
  $region1: #{tpu_custom_call.1} parent=0
    #allocation2 [shape = 'u8[4096]{0}', space=vmem, size = 0x1000, scoped, tag = 'input window, operand 0, single buffered']
    #allocation3 [shape = 's32[1]{0}', space=sflag, size = 0x4, scoped, tag = 'scoped memory for tpu_custom_call.1']
    #allocation4 [shape = 's32[1]{0}', space=sflag, size = 0x4, scoped, tag = 'scoped memory for tpu_custom_call.1']
    #allocation5 [shape = 'u8[12288]{0}', space=vmem, size = 0x3000, scoped, tag = 'input window, operand 1, single buffered']
    #allocation6 [shape = 's32[1]{0}', space=sflag, size = 0x4, scoped, tag = 'scoped memory for tpu_custom_call.1']
    #allocation7 [shape = 'u8[524288]{0}', space=vmem, size = 0x80000, scoped, tag = 'input window, operand 2, single buffered']
    #allocation8 [shape = 'u8[65536]{0}', space=vmem, size = 0x10000, scoped, tag = 'input window, operand 3, single buffered']
    #allocation9 [shape = 's32[1]{0}', space=sflag, size = 0x4, scoped, tag = 'scoped memory for tpu_custom_call.1']
    #allocation10 [shape = 'u8[65536]{0}', space=vmem, size = 0x10000, scoped, tag = 'input window, operand 4, single buffered']
    #allocation11 [shape = 'u8[12288]{0}', space=vmem, size = 0x3000, scoped, tag = 'output window, operand 0, single buffered']
    %10 = vsyncpa [#allocation3], 0
    %11 = vsyncpa [#allocation6], 0
    %12 = vsyncpa [#allocation9], 0
    %13 = vsyncpa [#allocation4], 0
    // Predicated region
    $region2: #{tpu_custom_call.1} parent=1 // pred_check
      _
    $region3: #{tpu_custom_call.1} parent=1 // pred_check_branch
      %15 = sbr.rel (0) target = $region5
    $region4: #{tpu_custom_call.1} parent=1 // pred_region
      %s17 = ssub.s32 128, 128
      %18 = vsyncadd [#allocation3], %s17
      %s20 = sshll.u32 [#allocation2], 4
      %s21 = int_to_ptr.vmem [resolvable:$true] %s20
      %23 = dma.hbm_to_vmem [thread:$0]  %s0, 128, %s21, [#allocation3]
    $region5: #{tpu_custom_call.1} parent=1 // pred_fallthru
      _
    // Predicated region
    $region6: #{tpu_custom_call.1} parent=1 // pred_check
      _
    $region7: #{tpu_custom_call.1} parent=1 // pred_check_branch
      %25 = sbr.rel (0) target = $region9
    $region8: #{tpu_custom_call.1} parent=1 // pred_region
      %s27 = ssub.s32 384, 384
      %28 = vsyncadd [#allocation6], %s27
      %s30 = sshll.u32 [#allocation5], 4
      %s31 = int_to_ptr.vmem [resolvable:$true] %s30
      %33 = dma.hbm_to_vmem [thread:$0]  %s1, 384, %s31, [#allocation6]
    $region9: #{tpu_custom_call.1} parent=1 // pred_fallthru
      _
    // Predicated region
    $region10: #{tpu_custom_call.1} parent=1 // pred_check
      _
    $region11: #{tpu_custom_call.1} parent=1 // pred_check_branch
      %35 = sbr.rel (0) target = $region13
    $region12: #{tpu_custom_call.1} parent=1 // pred_region
      %s37 = ssub.s32 16384, 16384
      %38 = vsyncadd [#allocation6], %s37
      %s39 = sshll.u32 [#allocation7], 4
      %s40 = int_to_ptr.vmem [resolvable:$true] %s39
      %45 = dma.hbm_to_vmem [thread:$0]  %s2, 16384, %s40, [#allocation6], 256, 256, 16
    $region13: #{tpu_custom_call.1} parent=1 // pred_fallthru
      _
    // Predicated region
    $region14: #{tpu_custom_call.1} parent=1 // pred_check
      _
    $region15: #{tpu_custom_call.1} parent=1 // pred_check_branch
      %47 = sbr.rel (0) target = $region17
    $region16: #{tpu_custom_call.1} parent=1 // pred_region
      %s49 = ssub.s32 2048, 2048
      %50 = vsyncadd [#allocation9], %s49
      %s51 = sshll.u32 [#allocation8], 4
      %s52 = int_to_ptr.vmem [resolvable:$true] %s51
      %57 = dma.hbm_to_vmem [thread:$0]  %s3, 2048, %s52, [#allocation9], 128, 128, 8
    $region17: #{tpu_custom_call.1} parent=1 // pred_fallthru
      _
    // Predicated region
    $region18: #{tpu_custom_call.1} parent=1 // pred_check
      _
    $region19: #{tpu_custom_call.1} parent=1 // pred_check_branch
      %59 = sbr.rel (0) target = $region21
    $region20: #{tpu_custom_call.1} parent=1 // pred_region
      %s61 = ssub.s32 2048, 2048
      %62 = vsyncadd [#allocation9], %s61
      %s63 = sshll.u32 [#allocation10], 4
      %s64 = int_to_ptr.vmem [resolvable:$true] %s63
      %69 = dma.hbm_to_vmem [thread:$0]  %s4, 2048, %s64, [#allocation9], 128, 128, 8
    $region21: #{tpu_custom_call.1} parent=1 // pred_fallthru
      _
    // Predicated region
    $region22: #{tpu_custom_call.1} parent=1 // pred_check
      _
    $region23: #{tpu_custom_call.1} parent=1 // pred_check_branch
      %71 = sbr.rel (0) target = $region25
    $region24: #{tpu_custom_call.1} parent=1 // pred_region
      %72 = dma.done [#allocation3], 128
    $region25: #{tpu_custom_call.1} parent=1 // pred_fallthru
      _
    // Predicated region
    $region26: #{tpu_custom_call.1} parent=1 // pred_check
      _
    $region27: #{tpu_custom_call.1} parent=1 // pred_check_branch
      %74 = sbr.rel (0) target = $region29
    $region28: #{tpu_custom_call.1} parent=1 // pred_region
      %75 = dma.done [#allocation6], 384
    $region29: #{tpu_custom_call.1} parent=1 // pred_fallthru
      _
    // Predicated region
    $region30: #{tpu_custom_call.1} parent=1 // pred_check
      _
    $region31: #{tpu_custom_call.1} parent=1 // pred_check_branch
      %77 = sbr.rel (0) target = $region33
    $region32: #{tpu_custom_call.1} parent=1 // pred_region
      %78 = dma.done [#allocation6], 16384
    $region33: #{tpu_custom_call.1} parent=1 // pred_fallthru
      _
    // Predicated region
    $region34: #{tpu_custom_call.1} parent=1 // pred_check
      _
    $region35: #{tpu_custom_call.1} parent=1 // pred_check_branch
      %80 = sbr.rel (0) target = $region37
    $region36: #{tpu_custom_call.1} parent=1 // pred_region
      %81 = dma.done [#allocation9], 2048
    $region37: #{tpu_custom_call.1} parent=1 // pred_fallthru
      _
    // Predicated region
    $region38: #{tpu_custom_call.1} parent=1 // pred_check
      _
    $region39: #{tpu_custom_call.1} parent=1 // pred_check_branch
      %83 = sbr.rel (0) target = $region41
    $region40: #{tpu_custom_call.1} parent=1 // pred_region
      %84 = dma.done [#allocation9], 2048
    $region41: #{tpu_custom_call.1} parent=1 // pred_fallthru
      _
    %v85 = vld [vmem:[#allocation7] sm:$0xff]
    %v86 = vld [vmem:[#allocation7 + $0x8] sm:$0xff]
    %v87 = vld [vmem:[#allocation7 + $0x10] sm:$0xff]
    %v88 = vld [vmem:[#allocation7 + $0x18] sm:$0xff]
    %v89 = vld [vmem:[#allocation7 + $0x20] sm:$0xff]
    %v90 = vld [vmem:[#allocation7 + $0x28] sm:$0xff]
    %v91 = vld [vmem:[#allocation7 + $0x30] sm:$0xff]
    %v92 = vld [vmem:[#allocation7 + $0x38] sm:$0xff]
    %v93 = vld [vmem:[#allocation7 + $0x40] sm:$0xff]
    %v94 = vld [vmem:[#allocation7 + $0x48] sm:$0xff]
    %v95 = vld [vmem:[#allocation7 + $0x50] sm:$0xff]
    %v96 = vld [vmem:[#allocation7 + $0x58] sm:$0xff]
    %v97 = vld [vmem:[#allocation7 + $0x60] sm:$0xff]
    %v98 = vld [vmem:[#allocation7 + $0x68] sm:$0xff]
    %v99 = vld [vmem:[#allocation7 + $0x70] sm:$0xff]
    %v100 = vld [vmem:[#allocation7 + $0x78] sm:$0xff]
    %v101 = vld [vmem:[#allocation7 + $0x80] sm:$0xff]
    %v102 = vld [vmem:[#allocation7 + $0x88] sm:$0xff]
    %v103 = vld [vmem:[#allocation7 + $0x90] sm:$0xff]
    %v104 = vld [vmem:[#allocation7 + $0x98] sm:$0xff]
    %v105 = vld [vmem:[#allocation7 + $0xa0] sm:$0xff]
    %v106 = vld [vmem:[#allocation7 + $0xa8] sm:$0xff]
    %v107 = vld [vmem:[#allocation7 + $0xb0] sm:$0xff]
    %v108 = vld [vmem:[#allocation7 + $0xb8] sm:$0xff]
    %v109 = vld [vmem:[#allocation7 + $0xc0] sm:$0xff]
    %v110 = vld [vmem:[#allocation7 + $0xc8] sm:$0xff]
    %v111 = vld [vmem:[#allocation7 + $0xd0] sm:$0xff]
    %v112 = vld [vmem:[#allocation7 + $0xd8] sm:$0xff]
    %v113 = vld [vmem:[#allocation7 + $0xe0] sm:$0xff]
    %v114 = vld [vmem:[#allocation7 + $0xe8] sm:$0xff]
    %v115 = vld [vmem:[#allocation7 + $0xf0] sm:$0xff]
    %v116 = vld [vmem:[#allocation7 + $0xf8] sm:$0xff]
    %v117 = vld [vmem:[#allocation7 + $0x100] sm:$0xff]
    %v118 = vld [vmem:[#allocation7 + $0x108] sm:$0xff]
    %v119 = vld [vmem:[#allocation7 + $0x110] sm:$0xff]
    %v120 = vld [vmem:[#allocation7 + $0x118] sm:$0xff]
    %v121 = vld [vmem:[#allocation7 + $0x120] sm:$0xff]
    %v122 = vld [vmem:[#allocation7 + $0x128] sm:$0xff]
    %v123 = vld [vmem:[#allocation7 + $0x130] sm:$0xff]
    %v124 = vld [vmem:[#allocation7 + $0x138] sm:$0xff]
    %v125 = vld [vmem:[#allocation7 + $0x140] sm:$0xff]
    %v126 = vld [vmem:[#allocation7 + $0x148] sm:$0xff]
    %v127 = vld [vmem:[#allocation7 + $0x150] sm:$0xff]
    %v128 = vld [vmem:[#allocation7 + $0x158] sm:$0xff]
    %v129 = vld [vmem:[#allocation7 + $0x160] sm:$0xff]
    %v130 = vld [vmem:[#allocation7 + $0x168] sm:$0xff]
    %v131 = vld [vmem:[#allocation7 + $0x170] sm:$0xff]
    %v132 = vld [vmem:[#allocation7 + $0x178] sm:$0xff]
    %v133 = vld [vmem:[#allocation7 + $0x180] sm:$0xff]
    %v134 = vld [vmem:[#allocation7 + $0x188] sm:$0xff]
    %v135 = vld [vmem:[#allocation7 + $0x190] sm:$0xff]
    %v136 = vld [vmem:[#allocation7 + $0x198] sm:$0xff]
    %v137 = vld [vmem:[#allocation7 + $0x1a0] sm:$0xff]
    %v138 = vld [vmem:[#allocation7 + $0x1a8] sm:$0xff]
    %v139 = vld [vmem:[#allocation7 + $0x1b0] sm:$0xff]
    %v140 = vld [vmem:[#allocation7 + $0x1b8] sm:$0xff]
    %v141 = vld [vmem:[#allocation7 + $0x1c0] sm:$0xff]
    %v142 = vld [vmem:[#allocation7 + $0x1c8] sm:$0xff]
    %v143 = vld [vmem:[#allocation7 + $0x1d0] sm:$0xff]
    %v144 = vld [vmem:[#allocation7 + $0x1d8] sm:$0xff]
    %v145 = vld [vmem:[#allocation7 + $0x1e0] sm:$0xff]
    %v146 = vld [vmem:[#allocation7 + $0x1e8] sm:$0xff]
    %v147 = vld [vmem:[#allocation7 + $0x1f0] sm:$0xff]
    %v148 = vld [vmem:[#allocation7 + $0x1f8] sm:$0xff]
    %v149 = vld [vmem:[#allocation7 + $0x200] sm:$0xff]
    %v150 = vld [vmem:[#allocation7 + $0x208] sm:$0xff]
    %v151 = vld [vmem:[#allocation7 + $0x210] sm:$0xff]
    %v152 = vld [vmem:[#allocation7 + $0x218] sm:$0xff]
    %v153 = vld [vmem:[#allocation7 + $0x220] sm:$0xff]
    %v154 = vld [vmem:[#allocation7 + $0x228] sm:$0xff]
    %v155 = vld [vmem:[#allocation7 + $0x230] sm:$0xff]
    %v156 = vld [vmem:[#allocation7 + $0x238] sm:$0xff]
    %v157 = vld [vmem:[#allocation7 + $0x240] sm:$0xff]
    %v158 = vld [vmem:[#allocation7 + $0x248] sm:$0xff]
    %v159 = vld [vmem:[#allocation7 + $0x250] sm:$0xff]
    %v160 = vld [vmem:[#allocation7 + $0x258] sm:$0xff]
    %v161 = vld [vmem:[#allocation7 + $0x260] sm:$0xff]
    %v162 = vld [vmem:[#allocation7 + $0x268] sm:$0xff]
    %v163 = vld [vmem:[#allocation7 + $0x270] sm:$0xff]
    %v164 = vld [vmem:[#allocation7 + $0x278] sm:$0xff]
    %v165 = vld [vmem:[#allocation7 + $0x280] sm:$0xff]
    %v166 = vld [vmem:[#allocation7 + $0x288] sm:$0xff]
    %v167 = vld [vmem:[#allocation7 + $0x290] sm:$0xff]
    %v168 = vld [vmem:[#allocation7 + $0x298] sm:$0xff]
    %v169 = vld [vmem:[#allocation7 + $0x2a0] sm:$0xff]
    %v170 = vld [vmem:[#allocation7 + $0x2a8] sm:$0xff]
    %v171 = vld [vmem:[#allocation7 + $0x2b0] sm:$0xff]
    %v172 = vld [vmem:[#allocation7 + $0x2b8] sm:$0xff]
    %v173 = vld [vmem:[#allocation7 + $0x2c0] sm:$0xff]
    %v174 = vld [vmem:[#allocation7 + $0x2c8] sm:$0xff]
    %v175 = vld [vmem:[#allocation7 + $0x2d0] sm:$0xff]
    %v176 = vld [vmem:[#allocation7 + $0x2d8] sm:$0xff]
    %v177 = vld [vmem:[#allocation7 + $0x2e0] sm:$0xff]
    %v178 = vld [vmem:[#allocation7 + $0x2e8] sm:$0xff]
    %v179 = vld [vmem:[#allocation7 + $0x2f0] sm:$0xff]
    %v180 = vld [vmem:[#allocation7 + $0x2f8] sm:$0xff]
    %v181 = vld [vmem:[#allocation7 + $0x300] sm:$0xff]
    %v182 = vld [vmem:[#allocation7 + $0x308] sm:$0xff]
    %v183 = vld [vmem:[#allocation7 + $0x310] sm:$0xff]
    %v184 = vld [vmem:[#allocation7 + $0x318] sm:$0xff]
    %v185 = vld [vmem:[#allocation7 + $0x320] sm:$0xff]
    %v186 = vld [vmem:[#allocation7 + $0x328] sm:$0xff]
    %v187 = vld [vmem:[#allocation7 + $0x330] sm:$0xff]
    %v188 = vld [vmem:[#allocation7 + $0x338] sm:$0xff]
    %v189 = vld [vmem:[#allocation7 + $0x340] sm:$0xff]
    %v190 = vld [vmem:[#allocation7 + $0x348] sm:$0xff]
    %v191 = vld [vmem:[#allocation7 + $0x350] sm:$0xff]
    %v192 = vld [vmem:[#allocation7 + $0x358] sm:$0xff]
    %v193 = vld [vmem:[#allocation7 + $0x360] sm:$0xff]
    %v194 = vld [vmem:[#allocation7 + $0x368] sm:$0xff]
    %v195 = vld [vmem:[#allocation7 + $0x370] sm:$0xff]
    %v196 = vld [vmem:[#allocation7 + $0x378] sm:$0xff]
    %v197 = vld [vmem:[#allocation7 + $0x380] sm:$0xff]
    %v198 = vld [vmem:[#allocation7 + $0x388] sm:$0xff]
    %v199 = vld [vmem:[#allocation7 + $0x390] sm:$0xff]
    %v200 = vld [vmem:[#allocation7 + $0x398] sm:$0xff]
    %v201 = vld [vmem:[#allocation7 + $0x3a0] sm:$0xff]
    %v202 = vld [vmem:[#allocation7 + $0x3a8] sm:$0xff]
    %v203 = vld [vmem:[#allocation7 + $0x3b0] sm:$0xff]
    %v204 = vld [vmem:[#allocation7 + $0x3b8] sm:$0xff]
    %v205 = vld [vmem:[#allocation7 + $0x3c0] sm:$0xff]
    %v206 = vld [vmem:[#allocation7 + $0x3c8] sm:$0xff]
    %v207 = vld [vmem:[#allocation7 + $0x3d0] sm:$0xff]
    %v208 = vld [vmem:[#allocation7 + $0x3d8] sm:$0xff]
    %v209 = vld [vmem:[#allocation7 + $0x3e0] sm:$0xff]
    %v210 = vld [vmem:[#allocation7 + $0x3e8] sm:$0xff]
    %v211 = vld [vmem:[#allocation7 + $0x3f0] sm:$0xff]
    %v212 = vld [vmem:[#allocation7 + $0x3f8] sm:$0xff]
    %v213 = vld [vmem:[#allocation8] sm:$0xff]
    %v214 = vld [vmem:[#allocation8 + $0x8] sm:$0xff]
    %v215 = vld [vmem:[#allocation8 + $0x10] sm:$0xff]
    %v216 = vld [vmem:[#allocation8 + $0x18] sm:$0xff]
    %v217 = vld [vmem:[#allocation8 + $0x20] sm:$0xff]
    %v218 = vld [vmem:[#allocation8 + $0x28] sm:$0xff]
    %v219 = vld [vmem:[#allocation8 + $0x30] sm:$0xff]
    %v220 = vld [vmem:[#allocation8 + $0x38] sm:$0xff]
    %v221 = vld [vmem:[#allocation8 + $0x40] sm:$0xff]
    %v222 = vld [vmem:[#allocation8 + $0x48] sm:$0xff]
    %v223 = vld [vmem:[#allocation8 + $0x50] sm:$0xff]
    %v224 = vld [vmem:[#allocation8 + $0x58] sm:$0xff]
    %v225 = vld [vmem:[#allocation8 + $0x60] sm:$0xff]
    %v226 = vld [vmem:[#allocation8 + $0x68] sm:$0xff]
    %v227 = vld [vmem:[#allocation8 + $0x70] sm:$0xff]
    %v228 = vld [vmem:[#allocation8 + $0x78] sm:$0xff]
    %v229 = vld [vmem:[#allocation10] sm:$0xff]
    %v230 = vld [vmem:[#allocation10 + $0x8] sm:$0xff]
    %v231 = vld [vmem:[#allocation10 + $0x10] sm:$0xff]
    %v232 = vld [vmem:[#allocation10 + $0x18] sm:$0xff]
    %v233 = vld [vmem:[#allocation10 + $0x20] sm:$0xff]
    %v234 = vld [vmem:[#allocation10 + $0x28] sm:$0xff]
    %v235 = vld [vmem:[#allocation10 + $0x30] sm:$0xff]
    %v236 = vld [vmem:[#allocation10 + $0x38] sm:$0xff]
    %v237 = vld [vmem:[#allocation10 + $0x40] sm:$0xff]
    %v238 = vld [vmem:[#allocation10 + $0x48] sm:$0xff]
    %v239 = vld [vmem:[#allocation10 + $0x50] sm:$0xff]
    %v240 = vld [vmem:[#allocation10 + $0x58] sm:$0xff]
    %v241 = vld [vmem:[#allocation10 + $0x60] sm:$0xff]
    %v242 = vld [vmem:[#allocation10 + $0x68] sm:$0xff]
    %v243 = vld [vmem:[#allocation10 + $0x70] sm:$0xff]
    %v244 = vld [vmem:[#allocation10 + $0x78] sm:$0xff]
    %v245 = vld [vmem:[#allocation5] sm:$0xff]
    %v246 = vld [vmem:[#allocation5 + $0x8] sm:$0xff]
    %v247 = vld [vmem:[#allocation5 + $0x10] sm:$0xff]
    %v248 = vld [vmem:[#allocation2] sm:$0xff]
    %249 = vmatprep.subr.mxu0 %v116
    %250 = vmatpush1.msra.mxu0 %v115
    %251 = vmatprep.subr.mxu0 %v114
    %252 = vmatpush1.msra.mxu0 %v113
    %253 = vmatprep.subr.mxu0 %v112
    %254 = vmatpush1.msra.mxu0 %v111
    %255 = vmatprep.subr.mxu0 %v110
    %256 = vmatpush1.msra.mxu0 %v109
    %257 = vmatprep.subr.mxu0 %v108
    %258 = vmatpush1.msra.mxu0 %v107
    %259 = vmatprep.subr.mxu0 %v106
    %260 = vmatpush1.msra.mxu0 %v105
    %261 = vmatprep.subr.mxu0 %v104
    %262 = vmatpush1.msra.mxu0 %v103
    %263 = vmatprep.subr.mxu0 %v102
    %264 = vmatpush1.msra.mxu0 %v101
    %265 = vmatprep.subr.mxu0 %v100
    %266 = vmatpush1.msra.mxu0 %v99
    %267 = vmatprep.subr.mxu0 %v98
    %268 = vmatpush1.msra.mxu0 %v97
    %269 = vmatprep.subr.mxu0 %v96
    %270 = vmatpush1.msra.mxu0 %v95
    %271 = vmatprep.subr.mxu0 %v94
    %272 = vmatpush1.msra.mxu0 %v93
    %273 = vmatprep.subr.mxu0 %v92
    %274 = vmatpush1.msra.mxu0 %v91
    %275 = vmatprep.subr.mxu0 %v90
    %276 = vmatpush1.msra.mxu0 %v89
    %277 = vmatprep.subr.mxu0 %v88
    %278 = vmatpush1.msra.mxu0 %v87
    %279 = vmatprep.subr.mxu0 %v86
    %280 = vmatpush1.msra.mxu0 %v85
    %281 = vmatprep.subr.mxu0 %v148
    %282 = vmatpush2.msra.mxu0 %v147
    %283 = vmatprep.subr.mxu0 %v146
    %284 = vmatpush2.msra.mxu0 %v145
    %285 = vmatprep.subr.mxu0 %v144
    %286 = vmatpush2.msra.mxu0 %v143
    %287 = vmatprep.subr.mxu0 %v142
    %288 = vmatpush2.msra.mxu0 %v141
    %289 = vmatprep.subr.mxu0 %v140
    %290 = vmatpush2.msra.mxu0 %v139
    %291 = vmatprep.subr.mxu0 %v138
    %292 = vmatpush2.msra.mxu0 %v137
    %293 = vmatprep.subr.mxu0 %v136
    %294 = vmatpush2.msra.mxu0 %v135
    %295 = vmatprep.subr.mxu0 %v134
    %296 = vmatpush2.msra.mxu0 %v133
    %297 = vmatprep.subr.mxu0 %v132
    %298 = vmatpush2.msra.mxu0 %v131
    %299 = vmatprep.subr.mxu0 %v130
    %300 = vmatpush2.msra.mxu0 %v129
    %301 = vmatprep.subr.mxu0 %v128
    %302 = vmatpush2.msra.mxu0 %v127
    %303 = vmatprep.subr.mxu0 %v126
    %304 = vmatpush2.msra.mxu0 %v125
    %305 = vmatprep.subr.mxu0 %v124
    %306 = vmatpush2.msra.mxu0 %v123
    %307 = vmatprep.subr.mxu0 %v122
    %308 = vmatpush2.msra.mxu0 %v121
    %309 = vmatprep.subr.mxu0 %v120
    %310 = vmatpush2.msra.mxu0 %v119
    %311 = vmatprep.subr.mxu0 %v118
    %312 = vmatpush2.msra.mxu0 %v117
    %313 = vmatprep.mubr.f32.mxu0 %v245
    %314 = vmatmul.mubr.f32.gmra.mxu0 %v248
    %v315 = vpop.f32.mrf.mxu0
    %v316 = vadd.f32 0.0, %v315
    %v317 = vpop.f32.mrf.mxu0
    %v318 = vadd.f32 0.0, %v317
    %319 = vdwg.mxu0
    %320 = vmatprep.subr.mxu0 %v180
    %321 = vmatpush1.msra.mxu0 %v179
    %322 = vmatprep.subr.mxu0 %v178
    %323 = vmatpush1.msra.mxu0 %v177
    %324 = vmatprep.subr.mxu0 %v176
    %325 = vmatpush1.msra.mxu0 %v175
    %326 = vmatprep.subr.mxu0 %v174
    %327 = vmatpush1.msra.mxu0 %v173
    %328 = vmatprep.subr.mxu0 %v172
    %329 = vmatpush1.msra.mxu0 %v171
    %330 = vmatprep.subr.mxu0 %v170
    %331 = vmatpush1.msra.mxu0 %v169
    %332 = vmatprep.subr.mxu0 %v168
    %333 = vmatpush1.msra.mxu0 %v167
    %334 = vmatprep.subr.mxu0 %v166
    %335 = vmatpush1.msra.mxu0 %v165
    %336 = vmatprep.subr.mxu0 %v164
    %337 = vmatpush1.msra.mxu0 %v163
    %338 = vmatprep.subr.mxu0 %v162
    %339 = vmatpush1.msra.mxu0 %v161
    %340 = vmatprep.subr.mxu0 %v160
    %341 = vmatpush1.msra.mxu0 %v159
    %342 = vmatprep.subr.mxu0 %v158
    %343 = vmatpush1.msra.mxu0 %v157
    %344 = vmatprep.subr.mxu0 %v156
    %345 = vmatpush1.msra.mxu0 %v155
    %346 = vmatprep.subr.mxu0 %v154
    %347 = vmatpush1.msra.mxu0 %v153
    %348 = vmatprep.subr.mxu0 %v152
    %349 = vmatpush1.msra.mxu0 %v151
    %350 = vmatprep.subr.mxu0 %v150
    %351 = vmatpush1.msra.mxu0 %v149
    %352 = vmatprep.subr.mxu0 %v212
    %353 = vmatpush2.msra.mxu0 %v211
    %354 = vmatprep.subr.mxu0 %v210
    %355 = vmatpush2.msra.mxu0 %v209
    %356 = vmatprep.subr.mxu0 %v208
    %357 = vmatpush2.msra.mxu0 %v207
    %358 = vmatprep.subr.mxu0 %v206
    %359 = vmatpush2.msra.mxu0 %v205
    %360 = vmatprep.subr.mxu0 %v204
    %361 = vmatpush2.msra.mxu0 %v203
    %362 = vmatprep.subr.mxu0 %v202
    %363 = vmatpush2.msra.mxu0 %v201
    %364 = vmatprep.subr.mxu0 %v200
    %365 = vmatpush2.msra.mxu0 %v199
    %366 = vmatprep.subr.mxu0 %v198
    %367 = vmatpush2.msra.mxu0 %v197
    %368 = vmatprep.subr.mxu0 %v196
    %369 = vmatpush2.msra.mxu0 %v195
    %370 = vmatprep.subr.mxu0 %v194
    %371 = vmatpush2.msra.mxu0 %v193
    %372 = vmatprep.subr.mxu0 %v192
    %373 = vmatpush2.msra.mxu0 %v191
    %374 = vmatprep.subr.mxu0 %v190
    %375 = vmatpush2.msra.mxu0 %v189
    %376 = vmatprep.subr.mxu0 %v188
    %377 = vmatpush2.msra.mxu0 %v187
    %378 = vmatprep.subr.mxu0 %v186
    %379 = vmatpush2.msra.mxu0 %v185
    %380 = vmatprep.subr.mxu0 %v184
    %381 = vmatpush2.msra.mxu0 %v183
    %382 = vmatprep.subr.mxu0 %v182
    %383 = vmatpush2.msra.mxu0 %v181
    %384 = vmatprep.mubr.f32.mxu0 %v247
    %385 = vmatmul.mubr.f32.gmra.mxu0 %v246
    %v386 = vpop.f32.mrf.mxu0
    %v387 = vadd.f32 %v316, %v386
    %v388 = vpop.f32.mrf.mxu0
    %v389 = vadd.f32 %v318, %v388
    %390 = vdwg.mxu0
    %v391 = vmul.f32 %v387, 0.5
    %v392 = vtanh.pop %v391
    %v393 = vadd.f32 %v392, 1.0
    %v394 = vmul.f32 %v393, 0.5
    %395 = vmatprep.subr.mxu0 0.0
    %396 = vmatpush1.msra.mxu0 %v228
    %397 = vmatprep.subr.mxu0 0.0
    %398 = vmatpush1.msra.mxu0 %v227
    %399 = vmatprep.subr.mxu0 0.0
    %400 = vmatpush1.msra.mxu0 %v226
    %401 = vmatprep.subr.mxu0 0.0
    %402 = vmatpush1.msra.mxu0 %v225
    %403 = vmatprep.subr.mxu0 0.0
    %404 = vmatpush1.msra.mxu0 %v224
    %405 = vmatprep.subr.mxu0 0.0
    %406 = vmatpush1.msra.mxu0 %v223
    %407 = vmatprep.subr.mxu0 0.0
    %408 = vmatpush1.msra.mxu0 %v222
    %409 = vmatprep.subr.mxu0 0.0
    %410 = vmatpush1.msra.mxu0 %v221
    %411 = vmatprep.subr.mxu0 0.0
    %412 = vmatpush1.msra.mxu0 %v220
    %413 = vmatprep.subr.mxu0 0.0
    %414 = vmatpush1.msra.mxu0 %v219
    %415 = vmatprep.subr.mxu0 0.0
    %416 = vmatpush1.msra.mxu0 %v218
    %417 = vmatprep.subr.mxu0 0.0
    %418 = vmatpush1.msra.mxu0 %v217
    %419 = vmatprep.subr.mxu0 0.0
    %420 = vmatpush1.msra.mxu0 %v216
    %421 = vmatprep.subr.mxu0 0.0
    %422 = vmatpush1.msra.mxu0 %v215
    %423 = vmatprep.subr.mxu0 0.0
    %424 = vmatpush1.msra.mxu0 %v214
    %425 = vmatprep.subr.mxu0 0.0
    %426 = vmatpush1.msra.mxu0 %v213
    %427 = vmatprep.subr.mxu0 0.0
    %428 = vmatpush2.msra.mxu0 0.0
    %429 = vmatprep.subr.mxu0 0.0
    %430 = vmatpush2.msra.mxu0 0.0
    %431 = vmatprep.subr.mxu0 0.0
    %432 = vmatpush2.msra.mxu0 0.0
    %433 = vmatprep.subr.mxu0 0.0
    %434 = vmatpush2.msra.mxu0 0.0
    %435 = vmatprep.subr.mxu0 0.0
    %436 = vmatpush2.msra.mxu0 0.0
    %437 = vmatprep.subr.mxu0 0.0
    %438 = vmatpush2.msra.mxu0 0.0
    %439 = vmatprep.subr.mxu0 0.0
    %440 = vmatpush2.msra.mxu0 0.0
    %441 = vmatprep.subr.mxu0 0.0
    %442 = vmatpush2.msra.mxu0 0.0
    %443 = vmatprep.subr.mxu0 0.0
    %444 = vmatpush2.msra.mxu0 0.0
    %445 = vmatprep.subr.mxu0 0.0
    %446 = vmatpush2.msra.mxu0 0.0
    %447 = vmatprep.subr.mxu0 0.0
    %448 = vmatpush2.msra.mxu0 0.0
    %449 = vmatprep.subr.mxu0 0.0
    %450 = vmatpush2.msra.mxu0 0.0
    %451 = vmatprep.subr.mxu0 0.0
    %452 = vmatpush2.msra.mxu0 0.0
    %453 = vmatprep.subr.mxu0 0.0
    %454 = vmatpush2.msra.mxu0 0.0
    %455 = vmatprep.subr.mxu0 0.0
    %456 = vmatpush2.msra.mxu0 0.0
    %457 = vmatprep.subr.mxu0 0.0
    %458 = vmatpush2.msra.mxu0 0.0
    %459 = vmatprep.mubr.f32.mxu0 0.0
    %460 = vmatmul.mubr.f32.gmra.mxu0 %v394
    %v461 = vpop.f32.mrf.mxu0
    %v462 = vadd.f32 %v389, %v461
    %v463 = vpop.f32.mrf.mxu0
    %464 = vdwg.mxu0
    %v465 = vmul.f32 %v462, 0.5
    %v466 = vtanh.pop %v465
    %v467 = vadd.f32 %v466, 1.0
    %v468 = vmul.f32 %v467, 0.5
    %469 = vmatprep.subr.mxu0 0.0
    %470 = vmatpush1.msra.mxu0 %v244
    %471 = vmatprep.subr.mxu0 0.0
    %472 = vmatpush1.msra.mxu0 %v243
    %473 = vmatprep.subr.mxu0 0.0
    %474 = vmatpush1.msra.mxu0 %v242
    %475 = vmatprep.subr.mxu0 0.0
    %476 = vmatpush1.msra.mxu0 %v241
    %477 = vmatprep.subr.mxu0 0.0
    %478 = vmatpush1.msra.mxu0 %v240
    %479 = vmatprep.subr.mxu0 0.0
    %480 = vmatpush1.msra.mxu0 %v239
    %481 = vmatprep.subr.mxu0 0.0
    %482 = vmatpush1.msra.mxu0 %v238
    %483 = vmatprep.subr.mxu0 0.0
    %484 = vmatpush1.msra.mxu0 %v237
    %485 = vmatprep.subr.mxu0 0.0
    %486 = vmatpush1.msra.mxu0 %v236
    %487 = vmatprep.subr.mxu0 0.0
    %488 = vmatpush1.msra.mxu0 %v235
    %489 = vmatprep.subr.mxu0 0.0
    %490 = vmatpush1.msra.mxu0 %v234
    %491 = vmatprep.subr.mxu0 0.0
    %492 = vmatpush1.msra.mxu0 %v233
    %493 = vmatprep.subr.mxu0 0.0
    %494 = vmatpush1.msra.mxu0 %v232
    %495 = vmatprep.subr.mxu0 0.0
    %496 = vmatpush1.msra.mxu0 %v231
    %497 = vmatprep.subr.mxu0 0.0
    %498 = vmatpush1.msra.mxu0 %v230
    %499 = vmatprep.subr.mxu0 0.0
    %500 = vmatpush1.msra.mxu0 %v229
    %501 = vmatprep.subr.mxu0 0.0
    %502 = vmatpush2.msra.mxu0 0.0
    %503 = vmatprep.subr.mxu0 0.0
    %504 = vmatpush2.msra.mxu0 0.0
    %505 = vmatprep.subr.mxu0 0.0
    %506 = vmatpush2.msra.mxu0 0.0
    %507 = vmatprep.subr.mxu0 0.0
    %508 = vmatpush2.msra.mxu0 0.0
    %509 = vmatprep.subr.mxu0 0.0
    %510 = vmatpush2.msra.mxu0 0.0
    %511 = vmatprep.subr.mxu0 0.0
    %512 = vmatpush2.msra.mxu0 0.0
    %513 = vmatprep.subr.mxu0 0.0
    %514 = vmatpush2.msra.mxu0 0.0
    %515 = vmatprep.subr.mxu0 0.0
    %516 = vmatpush2.msra.mxu0 0.0
    %517 = vmatprep.subr.mxu0 0.0
    %518 = vmatpush2.msra.mxu0 0.0
    %519 = vmatprep.subr.mxu0 0.0
    %520 = vmatpush2.msra.mxu0 0.0
    %521 = vmatprep.subr.mxu0 0.0
    %522 = vmatpush2.msra.mxu0 0.0
    %523 = vmatprep.subr.mxu0 0.0
    %524 = vmatpush2.msra.mxu0 0.0
    %525 = vmatprep.subr.mxu0 0.0
    %526 = vmatpush2.msra.mxu0 0.0
    %527 = vmatprep.subr.mxu0 0.0
    %528 = vmatpush2.msra.mxu0 0.0
    %529 = vmatprep.subr.mxu0 0.0
    %530 = vmatpush2.msra.mxu0 0.0
    %531 = vmatprep.subr.mxu0 0.0
    %532 = vmatpush2.msra.mxu0 0.0
    %533 = vmatprep.mubr.f32.mxu0 0.0
    %534 = vmatmul.mubr.f32.gmra.mxu0 %v468
    %v535 = vpop.f32.mrf.mxu0
    %v536 = vadd.f32 0.0, %v535
    %v537 = vpop.f32.mrf.mxu0
    %538 = vdwg.mxu0
    %539 = vst [vmem:[#allocation11] sm:$0xff] %v394
    %540 = vst [vmem:[#allocation11 + $0x8] sm:$0xff] %v468
    %541 = vst [vmem:[#allocation11 + $0x10] sm:$0xff] %v536
    // Predicated region
    $region42: #{tpu_custom_call.1} parent=1 // pred_check
      _
    $region43: #{tpu_custom_call.1} parent=1 // pred_check_branch
      %543 = sbr.rel (0) target = $region45
    $region44: #{tpu_custom_call.1} parent=1 // pred_region
      %s545 = ssub.s32 384, 384
      %546 = vsyncadd [#allocation4], %s545
      %s548 = sshll.u32 [#allocation11], 4
      %s549 = int_to_ptr.vmem [resolvable:$true] %s548
      %551 = dma.vmem_to_hbm [thread:$0]  %s549, 384, %s5, [#allocation4]
    $region45: #{tpu_custom_call.1} parent=1 // pred_fallthru
      _
    // Predicated region
    $region46: #{tpu_custom_call.1} parent=1 // pred_check
      _
    $region47: #{tpu_custom_call.1} parent=1 // pred_check_branch
      %553 = sbr.rel (0) target = $region49
    $region48: #{tpu_custom_call.1} parent=1 // pred_region
      %554 = dma.done [#allocation4], 384
    $region49: #{tpu_custom_call.1} parent=1 // pred_fallthru
      _
    %555 = vsyncpa [#allocation3], 1
    %556 = vsyncpa [#allocation6], 1
    %557 = vsyncpa [#allocation9], 1
    %558 = vsyncpa [#allocation4], 1

</llo_original>
